<compile_context>
chip_gen: v6e
topology: v6e:2x2x1
jax: 0.10.0
libtpu: 0.0.40
codegen_flags: <defaults>
</compile_context>

<pallas_src>
import functools

import jax
import jax.numpy as jnp
from jax.experimental import pallas as pl
from jax.experimental.pallas import tpu as pltpu

_LANE = 128        # vreg lane width
_SUBLANE = 8       # f32 sublane tile
_MiB = 1024 * 1024

# Cross-generation-safe VMEM budgets (v5e/v6e: 128 MiB physical, v7x: 64 MiB).
_RESIDENT_BUDGET = 40 * _MiB   # fused path: params + act buffers must fit this
_ACT_TILE_BUDGET = 16 * _MiB   # streamed-activation budget used to size tm
_VMEM_LIMIT_CAP = 56 * _MiB    # never ask the compiler for more than this


def _cdiv(a, b):
    return -(-a // b)


def _round_up(x, m):
    return ((x + m - 1) // m) * m


def _apply_activation(h, name):
    if name == "relu":
        return jnp.maximum(h, 0.0)
    if name == "gelu":
        return jax.nn.gelu(h, approximate=False)   # matches nn.GELU() default
    if name == "tanh":
        return jnp.tanh(h)
    if name == "sigmoid":
        return jax.nn.sigmoid(h)
    if name == "softplus":
        return jax.nn.softplus(h)
    if name == "none":
        return h
    raise ValueError(f"unsupported activation: {name}")


def _make_mlp_kernel(n_layers, act_name, compute_dtype):
    """Fused kernel: x tile + all resident (w, b) pairs -> final output tile."""
    def kernel(x_ref, *refs):
        o_ref = refs[-1]
        h = x_ref[...].astype(jnp.float32)
        for i in range(n_layers):
            w = refs[2 * i][...]                               # bf16 (or f32)
            b = refs[2 * i + 1][...].astype(jnp.float32)
            h = jnp.dot(h.astype(compute_dtype), w,
                        preferred_element_type=jnp.float32) + b
            if i != n_layers - 1:
                # Dropout is identity at inference; activation only on hidden
                # layers, exactly as in the PyTorch Sequential.
                h = _apply_activation(h, act_name)
        o_ref[...] = h.astype(o_ref.dtype)
    return kernel


def _make_layer_kernel(act_name, apply_act, compute_dtype):
    """Single Linear(+activation) layer kernel (fallback path)."""
    def kernel(x_ref, w_ref, b_ref, o_ref):
        h = jnp.dot(x_ref[...].astype(compute_dtype), w_ref[...],
                    preferred_element_type=jnp.float32)
        h = h + b_ref[...].astype(jnp.float32)
        if apply_act:
            h = _apply_activation(h, act_name)
        o_ref[...] = h.astype(o_ref.dtype)
    return kernel


def _choose_tm(B, row_bytes):
    """Batch tile (multiple of 8) and padded batch with <8 rows waste/tile."""
    tm_cap = (_ACT_TILE_BUDGET // max(row_bytes, 1)) // _SUBLANE * _SUBLANE
    tm_cap = max(_SUBLANE, min(2048, tm_cap))
    n_tiles = _cdiv(B, tm_cap)
    if B > 256:
        # v7x has 2 TensorCores sharded via dimension_semantics=("parallel",):
        # give mid/large batches at least 2 (an even number of) grid steps.
        n_tiles = _round_up(max(n_tiles, 2), 2)
    tm = _round_up(_cdiv(B, n_tiles), _SUBLANE)
    b_pad = tm * n_tiles
    return tm, b_pad


def _vmem_limit(param_bytes, tm, din_pad, dout_pad, max_pad, x_bytes):
    needed = (param_bytes                                    # single-buffered
              + 2 * tm * (din_pad + dout_pad) * x_bytes      # in/out tiles x2
              + 2 * tm * max_pad * 4                          # live f32 interm.
              + 8 * _MiB)                                     # headroom
    return int(min(max(needed, 32 * _MiB), _VMEM_LIMIT_CAP))


def _mlp_forward_layerwise(x_in, padded_params, *, activation, tm):
    """Fallback when the full weight set cannot stay VMEM-resident (v7x)."""
    # TODO(synk): a single layer wider than the VMEM cap still needs a
    # K/N-tiled matmul grid; here each layer's full weight is resident alone.
    n_layers = len(padded_params)
    b_pad = x_in.shape[0]
    h = x_in
    for li, (w, b) in enumerate(padded_params):
        din_pad, dout_pad = w.shape
        apply_act = li != n_layers - 1
        param_bytes = w.size * w.dtype.itemsize + b.size * b.dtype.itemsize
        x_bytes = h.dtype.itemsize
        h = pl.pallas_call(
            _make_layer_kernel(activation, apply_act, w.dtype),
            out_shape=jax.ShapeDtypeStruct((b_pad, dout_pad), x_in.dtype),
            grid=(b_pad // tm,),
            in_specs=[
                pl.BlockSpec((tm, din_pad), lambda i: (i, 0)),
                pl.BlockSpec(w.shape, lambda i: (0, 0),
                             pipeline_mode=pl.Buffered(1)),
                pl.BlockSpec(b.shape, lambda i: (0, 0),
                             pipeline_mode=pl.Buffered(1)),
            ],
            out_specs=pl.BlockSpec((tm, dout_pad), lambda i: (i, 0)),
            compiler_params=pltpu.CompilerParams(
                dimension_semantics=("parallel",),
                vmem_limit_bytes=_vmem_limit(param_bytes, tm, din_pad,
                                             dout_pad, max(din_pad, dout_pad),
                                             x_bytes)),
        )(h, w, b)
    return h


@functools.partial(jax.jit, static_argnames=("activation", "out_dim"))
def mlp_forward_pallas(x, padded_params, *, activation, out_dim):
    """Whole-MLP forward, fused into one pallas_call when weights fit VMEM."""
    B, Din = x.shape
    n_layers = len(padded_params)
    din_pad = padded_params[0][0].shape[0]
    dout_pad = padded_params[-1][0].shape[1]
    max_pad = max([din_pad] + [w.shape[1] for w, _ in padded_params])
    compute_dtype = padded_params[0][0].dtype
    x_bytes = x.dtype.itemsize

    # Per-batch-row streamed bytes (double-buffered in/out + live f32 interm.).
    row_bytes = 2 * (din_pad + dout_pad) * x_bytes + 2 * max_pad * 4
    tm, b_pad = _choose_tm(B, row_bytes)

    # Pad batch/features only when actually needed (skip the extra HBM pass
    # when the input is already lane/sublane aligned).
    if b_pad != B or din_pad != Din:
        x_in = jnp.zeros((b_pad, din_pad), x.dtype).at[:B, :Din].set(x)
    else:
        x_in = x

    param_bytes = sum(w.size * w.dtype.itemsize + b.size * b.dtype.itemsize
                      for w, b in padded_params)
    act_buf_bytes = 2 * tm * (din_pad + dout_pad) * x_bytes + 2 * tm * max_pad * 4

    if param_bytes + act_buf_bytes > _RESIDENT_BUDGET:
        # Weight set too large to keep fully resident (esp. v7x's 64 MiB):
        # run layer-by-layer, one resident weight at a time.
        out = _mlp_forward_layerwise(x_in, padded_params,
                                     activation=activation, tm=tm)
    else:
        kernel = _make_mlp_kernel(n_layers, activation, compute_dtype)
        param_specs, flat_params = [], []
        for w, b in padded_params:
            # Constant index_map -> fetched once, stays resident for every
            # batch tile; single-buffered (double-buffering a never-changing
            # block just wastes VMEM).
            param_specs.append(pl.BlockSpec(w.shape, lambda i: (0, 0),
                                            pipeline_mode=pl.Buffered(1)))
            param_specs.append(pl.BlockSpec(b.shape, lambda i: (0, 0),
                                            pipeline_mode=pl.Buffered(1)))
            flat_params.extend([w, b])

        out = pl.pallas_call(
            kernel,
            out_shape=jax.ShapeDtypeStruct((b_pad, dout_pad), x.dtype),
            grid=(b_pad // tm,),
            in_specs=[pl.BlockSpec((tm, din_pad), lambda i: (i, 0))] + param_specs,
            out_specs=pl.BlockSpec((tm, dout_pad), lambda i: (i, 0)),
            compiler_params=pltpu.CompilerParams(
                dimension_semantics=("parallel",),
                vmem_limit_bytes=_vmem_limit(param_bytes, tm, din_pad,
                                             dout_pad, max_pad, x_bytes)),
        )(x_in, *flat_params)

    if b_pad != B or dout_pad != out_dim:
        out = out[:B, :out_dim]
    return out


class MLPPallas:
    """Mirror of the PyTorch MLP module (inference semantics).

    model = [Linear, (Dropout, Act, [BatchNorm])]* , Linear
    Dropout is identity at inference; batch_norm=False in this config.
    """

    def __init__(self, config, input_dim, output_dim, key,
                 weight_dtype=jnp.bfloat16):
        hidden_dims = [input_dim] + list(config["hidden_size"]) + [output_dim]
        self.activation = config["activation"]
        self.output_dim = output_dim
        self.weight_dtype = weight_dtype
        self.params = []          # true-shape f32 params (for the references)
        self.padded_params = []   # 128-lane padded params (for the kernel)
        # TODO(synk): BatchNorm1d branch not implemented (config['batch_norm']
        # is False here; the reference's bare nn.BatchNorm1d() call is itself invalid).
        for i in range(len(hidden_dims) - 1):
            din, dout = hidden_dims[i], hidden_dims[i + 1]
            key, kw, kb = jax.random.split(key, 3)
            # PyTorch nn.Linear default init: U(-1/sqrt(din), 1/sqrt(din)),
            # stored transposed so the kernel computes x @ W + b.
            bound = 1.0 / (din ** 0.5)
            w = jax.random.uniform(kw, (din, dout), jnp.float32, -bound, bound)
            b = jax.random.uniform(kb, (dout,), jnp.float32, -bound, bound)
            self.params.append((w, b))

            din_pad = _round_up(din, _LANE)
            dout_pad = _round_up(dout, _LANE)
            # Padded rows/cols are zero: required so padded hidden columns
            # (which become nonzero after e.g. sigmoid/softplus) are killed
            # by the next layer's zero padded rows.
            w_pad = jnp.zeros((din_pad, dout_pad), weight_dtype
                              ).at[:din, :dout].set(w.astype(weight_dtype))
            b_pad = jnp.zeros((1, dout_pad), jnp.float32).at[0, :dout].set(b)
            self.padded_params.append((w_pad, b_pad))

    def __call__(self, h):
        return mlp_forward_pallas(
            h, self.padded_params,
            activation=self.activation, out_dim=self.output_dim)

    def reference(self, h, match_kernel_numerics=True):
        """Pure-JAX reference (eval mode).

        match_kernel_numerics=True replicates the kernel's bf16-input /
        f32-accumulate matmuls (tight tolerance); False is the plain f32
        PyTorch-equivalent math (loose tolerance vs the bf16 kernel).
        """
        n = len(self.params)
        for i, (w, b) in enumerate(self.params):
            if match_kernel_numerics:
                h = jnp.dot(h.astype(self.weight_dtype),
                            w.astype(self.weight_dtype),
                            preferred_element_type=jnp.float32) + b
            else:
                h = h @ w + b
            if i != n - 1:
                h = _apply_activation(h, self.activation)
        return h


if __name__ == "__main__":
    input_dim, output_dim = 16, 4
    batch = 8

    key = jax.random.PRNGKey(0)
    key, k_in = jax.random.split(key)
    x = jax.random.normal(k_in, (batch, input_dim), jnp.float32)

    for act in ("relu", "sigmoid"):   # sigmoid exercises nonzero padded cols
        config = {
            "hidden_size": [32, 32],
            "dropout": 0.1,           # identity at inference
            "activation": act,
            "batch_norm": False,
        }
        key, k_mlp = jax.random.split(key)
        mlp = MLPPallas(config, input_dim, output_dim, k_mlp)

        out = jax.block_until_ready(mlp(x))
        assert out.shape == (batch, output_dim)
        assert jnp.all(jnp.isfinite(out))

        # Tight check against a reference with matching (bf16-in, f32-acc) numerics.
        ref_bf16 = mlp.reference(x, match_kernel_numerics=True)
        assert jnp.allclose(out, ref_bf16, atol=1e-4, rtol=1e-4), \
            f"[{act}] max abs err vs bf16 ref: {jnp.max(jnp.abs(out - ref_bf16))}"

        # Loose check against the full-f32 PyTorch-equivalent math.
        ref_f32 = mlp.reference(x, match_kernel_numerics=False)
        assert jnp.allclose(out, ref_f32, atol=5e-2, rtol=5e-2), \
            f"[{act}] max abs err vs f32 ref: {jnp.max(jnp.abs(out - ref_f32))}"

    print("KERNEL_OK")
</pallas_src>

<mosaic_0001>
module attributes {stable_mosaic.version = 11 : i64} {
  func.func @kernel(%arg0: i32, %arg1: memref<8x128xf32, #tpu.memory_space<vmem>>, %arg2: memref<128x128xbf16, #tpu.memory_space<vmem>>, %arg3: memref<1x128xf32, #tpu.memory_space<vmem>>, %arg4: memref<128x128xbf16, #tpu.memory_space<vmem>>, %arg5: memref<1x128xf32, #tpu.memory_space<vmem>>, %arg6: memref<128x128xbf16, #tpu.memory_space<vmem>>, %arg7: memref<1x128xf32, #tpu.memory_space<vmem>>, %arg8: memref<8x128xf32, #tpu.memory_space<vmem>>) attributes {dimension_semantics = [#tpu.dimension_semantics<parallel>], iteration_bounds = array<i64: 1>, scalar_prefetch = 0 : i64, scratch_operands = 0 : i64, tpu.core_type = #tpu.core_type<tc>, window_params = [{transform_indices = @transform_0, window_bounds = array<i64: 8, 128>}, {pipeline_mode = #tpu.pipeline_mode<synchronous>, transform_indices = @transform_1, window_bounds = array<i64: 128, 128>}, {pipeline_mode = #tpu.pipeline_mode<synchronous>, transform_indices = @transform_2, window_bounds = array<i64: 1, 128>}, {pipeline_mode = #tpu.pipeline_mode<synchronous>, transform_indices = @transform_3, window_bounds = array<i64: 128, 128>}, {pipeline_mode = #tpu.pipeline_mode<synchronous>, transform_indices = @transform_4, window_bounds = array<i64: 1, 128>}, {pipeline_mode = #tpu.pipeline_mode<synchronous>, transform_indices = @transform_5, window_bounds = array<i64: 128, 128>}, {pipeline_mode = #tpu.pipeline_mode<synchronous>, transform_indices = @transform_6, window_bounds = array<i64: 1, 128>}, {transform_indices = @transform_7, window_bounds = array<i64: 8, 128>}]} {
    %c0 = arith.constant 0 : index
    %c0_0 = arith.constant 0 : index
    %0 = vector.load %arg1[%c0, %c0_0] : memref<8x128xf32, #tpu.memory_space<vmem>>, vector<8x128xf32>
    %c0_1 = arith.constant 0 : index
    %c0_2 = arith.constant 0 : index
    %1 = vector.load %arg2[%c0_1, %c0_2] : memref<128x128xbf16, #tpu.memory_space<vmem>>, vector<128x128xbf16>
    %c0_3 = arith.constant 0 : index
    %c0_4 = arith.constant 0 : index
    %2 = vector.load %arg3[%c0_3, %c0_4] : memref<1x128xf32, #tpu.memory_space<vmem>>, vector<1x128xf32>
    %3 = arith.truncf %0 : vector<8x128xf32> to vector<8x128xbf16>
    %cst = arith.constant dense<0.000000e+00> : vector<8x128xf32>
    %4 = tpu.matmul %3, %1, %cst {dimension_numbers = #tpu.dot_dimension_numbers<[1], [0], [0], [1], [0, 0, 1, 1], [], []>} : vector<8x128xbf16>, vector<128x128xbf16>, vector<8x128xf32> -> vector<8x128xf32>
    %5 = vector.broadcast %2 : vector<1x128xf32> to vector<8x128xf32>
    %6 = arith.addf %4, %5 : vector<8x128xf32>
    %cst_5 = arith.constant 0.000000e+00 : f32
    %7 = vector.broadcast %cst_5 : f32 to vector<8x128xf32>
    %8 = arith.maximumf %6, %7 : vector<8x128xf32>
    %c0_6 = arith.constant 0 : index
    %c0_7 = arith.constant 0 : index
    %9 = vector.load %arg4[%c0_6, %c0_7] : memref<128x128xbf16, #tpu.memory_space<vmem>>, vector<128x128xbf16>
    %c0_8 = arith.constant 0 : index
    %c0_9 = arith.constant 0 : index
    %10 = vector.load %arg5[%c0_8, %c0_9] : memref<1x128xf32, #tpu.memory_space<vmem>>, vector<1x128xf32>
    %11 = arith.truncf %8 : vector<8x128xf32> to vector<8x128xbf16>
    %cst_10 = arith.constant dense<0.000000e+00> : vector<8x128xf32>
    %12 = tpu.matmul %11, %9, %cst_10 {dimension_numbers = #tpu.dot_dimension_numbers<[1], [0], [0], [1], [0, 0, 1, 1], [], []>} : vector<8x128xbf16>, vector<128x128xbf16>, vector<8x128xf32> -> vector<8x128xf32>
    %13 = vector.broadcast %10 : vector<1x128xf32> to vector<8x128xf32>
    %14 = arith.addf %12, %13 : vector<8x128xf32>
    %cst_11 = arith.constant 0.000000e+00 : f32
    %15 = vector.broadcast %cst_11 : f32 to vector<8x128xf32>
    %16 = arith.maximumf %14, %15 : vector<8x128xf32>
    %c0_12 = arith.constant 0 : index
    %c0_13 = arith.constant 0 : index
    %17 = vector.load %arg6[%c0_12, %c0_13] : memref<128x128xbf16, #tpu.memory_space<vmem>>, vector<128x128xbf16>
    %c0_14 = arith.constant 0 : index
    %c0_15 = arith.constant 0 : index
    %18 = vector.load %arg7[%c0_14, %c0_15] : memref<1x128xf32, #tpu.memory_space<vmem>>, vector<1x128xf32>
    %19 = arith.truncf %16 : vector<8x128xf32> to vector<8x128xbf16>
    %cst_16 = arith.constant dense<0.000000e+00> : vector<8x128xf32>
    %20 = tpu.matmul %19, %17, %cst_16 {dimension_numbers = #tpu.dot_dimension_numbers<[1], [0], [0], [1], [0, 0, 1, 1], [], []>} : vector<8x128xbf16>, vector<128x128xbf16>, vector<8x128xf32> -> vector<8x128xf32>
    %21 = vector.broadcast %18 : vector<1x128xf32> to vector<8x128xf32>
    %22 = arith.addf %20, %21 : vector<8x128xf32>
    %c0_17 = arith.constant 0 : index
    %c0_18 = arith.constant 0 : index
    %23 = vector.load %arg8[%c0_17, %c0_18] : memref<8x128xf32, #tpu.memory_space<vmem>>, vector<8x128xf32>
    tpu.vector_store %arg8[%c0_17, %c0_18], %22 {strides = array<i32>} : memref<8x128xf32, #tpu.memory_space<vmem>>, vector<8x128xf32>,
    return
  }
  func.func @transform_0(%arg0: i32) -> (i32, i32) {
    %c0_i32 = arith.constant 0 : i32
    %c0_i32_0 = arith.constant 0 : i32
    return %arg0, %c0_i32 : i32, i32
  }
  func.func @transform_1(%arg0: i32) -> (i32, i32) {
    %c0_i32 = arith.constant 0 : i32
    %c0_i32_0 = arith.constant 0 : i32
    %c0_i32_1 = arith.constant 0 : i32
    return %c0_i32, %c0_i32_0 : i32, i32
  }
  func.func @transform_2(%arg0: i32) -> (i32, i32) {
    %c0_i32 = arith.constant 0 : i32
    %c0_i32_0 = arith.constant 0 : i32
    %c0_i32_1 = arith.constant 0 : i32
    return %c0_i32, %c0_i32_0 : i32, i32
  }
  func.func @transform_3(%arg0: i32) -> (i32, i32) {
    %c0_i32 = arith.constant 0 : i32
    %c0_i32_0 = arith.constant 0 : i32
    %c0_i32_1 = arith.constant 0 : i32
    return %c0_i32, %c0_i32_0 : i32, i32
  }
  func.func @transform_4(%arg0: i32) -> (i32, i32) {
    %c0_i32 = arith.constant 0 : i32
    %c0_i32_0 = arith.constant 0 : i32
    %c0_i32_1 = arith.constant 0 : i32
    return %c0_i32, %c0_i32_0 : i32, i32
  }
  func.func @transform_5(%arg0: i32) -> (i32, i32) {
    %c0_i32 = arith.constant 0 : i32
    %c0_i32_0 = arith.constant 0 : i32
    %c0_i32_1 = arith.constant 0 : i32
    return %c0_i32, %c0_i32_0 : i32, i32
  }
  func.func @transform_6(%arg0: i32) -> (i32, i32) {
    %c0_i32 = arith.constant 0 : i32
    %c0_i32_0 = arith.constant 0 : i32
    %c0_i32_1 = arith.constant 0 : i32
    return %c0_i32, %c0_i32_0 : i32, i32
  }
  func.func @transform_7(%arg0: i32) -> (i32, i32) {
    %c0_i32 = arith.constant 0 : i32
    %c0_i32_0 = arith.constant 0 : i32
    return %arg0, %c0_i32 : i32, i32
  }
}

</mosaic_0001>

<llo_original>
// kernel: mlp_forward_pallas.1
$region0: #{mlp_forward_pallas.1}
  #allocation0 [shape = 'u32[]', space=smem, size = 0x4, offset = 0x4, fixed_abs, tag = 'smem constant byte address 0x4 - core index']
  #allocation1 [shape = 'u32[144,128]{1,0:T(1,128)}', space=vmem, size = 0x12000, scoped, tag = 'internal scratch']
  %s0 = inlined_call_operand.vmem [shape: f32[8,128], index: 0, kind: input, shape index: {}]
  %s1 = inlined_call_operand.hbm [shape: bf16[128,128], index: 1, kind: input, shape index: {}]
  %s2 = inlined_call_operand.vmem [shape: f32[1,128], index: 2, kind: input, shape index: {}]
  %s3 = inlined_call_operand.hbm [shape: bf16[128,128], index: 3, kind: input, shape index: {}]
  %s4 = inlined_call_operand.vmem [shape: f32[1,128], index: 4, kind: input, shape index: {}]
  %s5 = inlined_call_operand.hbm [shape: bf16[128,128], index: 5, kind: input, shape index: {}]
  %s6 = inlined_call_operand.vmem [shape: f32[1,128], index: 6, kind: input, shape index: {}]
  %s7 = inlined_call_operand.vmem [shape: f32[8,128], index: 7, kind: output, shape index: {}]
  %s8 = sld [smem:[#allocation0]]
  $region50: #{mlp_forward_pallas.1} parent=0
    _
  %s10 = ssub.s32 1, %s8
  %s11 = scalar_select 0, %s10, %s8
  $region1: #{mlp_forward_pallas.1} parent=0
    #allocation2 [shape = 'u8[32768]{0}', space=vmem, size = 0x8000, scoped, tag = 'input window, operand 1, single buffered']
    #allocation3 [shape = 's32[1]{0}', space=sflag, size = 0x4, scoped, tag = 'scoped memory for mlp_forward_pallas.1']
    #allocation4 [shape = 'u8[32768]{0}', space=vmem, size = 0x8000, scoped, tag = 'input window, operand 3, single buffered']
    #allocation5 [shape = 's32[1]{0}', space=sflag, size = 0x4, scoped, tag = 'scoped memory for mlp_forward_pallas.1']
    #allocation6 [shape = 'u8[32768]{0}', space=vmem, size = 0x8000, scoped, tag = 'input window, operand 5, single buffered']
    %12 = vsyncpa [#allocation3], 0
    %13 = vsyncpa [#allocation5], 0
    // Predicated region
    $region2: #{mlp_forward_pallas.1} parent=1 // pred_check
      _
    $region3: #{mlp_forward_pallas.1} parent=1 // pred_check_branch
      %15 = sbr.rel (0) target = $region5
    $region4: #{mlp_forward_pallas.1} parent=1 // pred_region
      _
    $region5: #{mlp_forward_pallas.1} parent=1 // pred_fallthru
      _
    // Predicated region
    $region6: #{mlp_forward_pallas.1} parent=1 // pred_check
      _
    $region7: #{mlp_forward_pallas.1} parent=1 // pred_check_branch
      %17 = sbr.rel (0) target = $region9
    $region8: #{mlp_forward_pallas.1} parent=1 // pred_region
      %s19 = ssub.s32 1024, 1024
      %20 = vsyncadd [#allocation3], %s19
      %s21 = sshll.u32 [#allocation2], 4
      %s22 = int_to_ptr.vmem [resolvable:$true] %s21
      %27 = dma.hbm_to_vmem [thread:$0]  %s1, 1024, %s22, [#allocation3], 64, 64, 4
    $region9: #{mlp_forward_pallas.1} parent=1 // pred_fallthru
      _
    // Predicated region
    $region10: #{mlp_forward_pallas.1} parent=1 // pred_check
      _
    $region11: #{mlp_forward_pallas.1} parent=1 // pred_check_branch
      %29 = sbr.rel (0) target = $region13
    $region12: #{mlp_forward_pallas.1} parent=1 // pred_region
      _
    $region13: #{mlp_forward_pallas.1} parent=1 // pred_fallthru
      _
    // Predicated region
    $region14: #{mlp_forward_pallas.1} parent=1 // pred_check
      _
    $region15: #{mlp_forward_pallas.1} parent=1 // pred_check_branch
      %31 = sbr.rel (0) target = $region17
    $region16: #{mlp_forward_pallas.1} parent=1 // pred_region
      %s33 = ssub.s32 1024, 1024
      %34 = vsyncadd [#allocation5], %s33
      %s35 = sshll.u32 [#allocation4], 4
      %s36 = int_to_ptr.vmem [resolvable:$true] %s35
      %41 = dma.hbm_to_vmem [thread:$0]  %s3, 1024, %s36, [#allocation5], 64, 64, 4
    $region17: #{mlp_forward_pallas.1} parent=1 // pred_fallthru
      _
    // Predicated region
    $region18: #{mlp_forward_pallas.1} parent=1 // pred_check
      _
    $region19: #{mlp_forward_pallas.1} parent=1 // pred_check_branch
      %43 = sbr.rel (0) target = $region21
    $region20: #{mlp_forward_pallas.1} parent=1 // pred_region
      _
    $region21: #{mlp_forward_pallas.1} parent=1 // pred_fallthru
      _
    // Predicated region
    $region22: #{mlp_forward_pallas.1} parent=1 // pred_check
      _
    $region23: #{mlp_forward_pallas.1} parent=1 // pred_check_branch
      %45 = sbr.rel (0) target = $region25
    $region24: #{mlp_forward_pallas.1} parent=1 // pred_region
      %s47 = ssub.s32 1024, 1024
      %48 = vsyncadd [#allocation5], %s47
      %s49 = sshll.u32 [#allocation6], 4
      %s50 = int_to_ptr.vmem [resolvable:$true] %s49
      %55 = dma.hbm_to_vmem [thread:$0]  %s5, 1024, %s50, [#allocation5], 64, 64, 4
    $region25: #{mlp_forward_pallas.1} parent=1 // pred_fallthru
      _
    // Predicated region
    $region26: #{mlp_forward_pallas.1} parent=1 // pred_check
      _
    $region27: #{mlp_forward_pallas.1} parent=1 // pred_check_branch
      %57 = sbr.rel (0) target = $region29
    $region28: #{mlp_forward_pallas.1} parent=1 // pred_region
      _
    $region29: #{mlp_forward_pallas.1} parent=1 // pred_fallthru
      _
    // Predicated region
    $region30: #{mlp_forward_pallas.1} parent=1 // pred_check
      _
    $region31: #{mlp_forward_pallas.1} parent=1 // pred_check_branch
      %59 = sbr.rel (0) target = $region33
    $region32: #{mlp_forward_pallas.1} parent=1 // pred_region
      %60 = dma.done [#allocation3], 1024
    $region33: #{mlp_forward_pallas.1} parent=1 // pred_fallthru
      _
    // Predicated region
    $region34: #{mlp_forward_pallas.1} parent=1 // pred_check
      _
    $region35: #{mlp_forward_pallas.1} parent=1 // pred_check_branch
      %62 = sbr.rel (0) target = $region37
    $region36: #{mlp_forward_pallas.1} parent=1 // pred_region
      %63 = dma.done [#allocation5], 1024
    $region37: #{mlp_forward_pallas.1} parent=1 // pred_fallthru
      _
    // Predicated region
    $region38: #{mlp_forward_pallas.1} parent=1 // pred_check
      _
    $region39: #{mlp_forward_pallas.1} parent=1 // pred_check_branch
      %65 = sbr.rel (0) target = $region41
    $region40: #{mlp_forward_pallas.1} parent=1 // pred_region
      %66 = dma.done [#allocation5], 1024
    $region41: #{mlp_forward_pallas.1} parent=1 // pred_fallthru
      _
    %v68 = vld [vmem:[%s0] sm:$0xff]
    %v69 = vld [vmem:[#allocation2] sm:$0xf]
    %v70 = vld [vmem:[#allocation2 + $0x4] sm:$0xf]
    %v71 = vld [vmem:[#allocation2 + $0x8] sm:$0xf]
    %v72 = vld [vmem:[#allocation2 + $0xc] sm:$0xf]
    %v73 = vld [vmem:[#allocation2 + $0x10] sm:$0xf]
    %v74 = vld [vmem:[#allocation2 + $0x14] sm:$0xf]
    %v75 = vld [vmem:[#allocation2 + $0x18] sm:$0xf]
    %v76 = vld [vmem:[#allocation2 + $0x1c] sm:$0xf]
    %v77 = vld [vmem:[#allocation2 + $0x20] sm:$0xf]
    %v78 = vld [vmem:[#allocation2 + $0x24] sm:$0xf]
    %v79 = vld [vmem:[#allocation2 + $0x28] sm:$0xf]
    %v80 = vld [vmem:[#allocation2 + $0x2c] sm:$0xf]
    %v81 = vld [vmem:[#allocation2 + $0x30] sm:$0xf]
    %v82 = vld [vmem:[#allocation2 + $0x34] sm:$0xf]
    %v83 = vld [vmem:[#allocation2 + $0x38] sm:$0xf]
    %v84 = vld [vmem:[#allocation2 + $0x3c] sm:$0xf]
    %v85 = vld [vmem:[%s2] sm:$0x1]
    %v86 = vpack.c.bf16 %v68, %v68
    %v88 = vlaneseq
    %v89 = vshrl.u32 %v88, 7
    %v90 = vsub.s32 0, %v89
    %v91 = vrot.slane %v85, %v90
    %v109 = vunpack.c.l.b16 %v69
    %v110 = vunpack.c.l.b16 %v70
    %v111 = vunpack.c.l.b16 %v71
    %v112 = vunpack.c.l.b16 %v72
    %v113 = vunpack.c.l.b16 %v73
    %v114 = vunpack.c.l.b16 %v74
    %v115 = vunpack.c.l.b16 %v75
    %v116 = vunpack.c.l.b16 %v76
    %v117 = vunpack.c.l.b16 %v77
    %v118 = vunpack.c.l.b16 %v78
    %v119 = vunpack.c.l.b16 %v79
    %v120 = vunpack.c.l.b16 %v80
    %v121 = vunpack.c.l.b16 %v81
    %v122 = vunpack.c.l.b16 %v82
    %v123 = vunpack.c.l.b16 %v83
    %v124 = vunpack.c.l.b16 %v84
    %v125 = vpack.c.b16 %v110, %v109
    %v126 = vpack.c.b16 %v112, %v111
    %v127 = vpack.c.b16 %v114, %v113
    %v128 = vpack.c.b16 %v116, %v115
    %v129 = vpack.c.b16 %v118, %v117
    %v130 = vpack.c.b16 %v120, %v119
    %v131 = vpack.c.b16 %v122, %v121
    %v132 = vpack.c.b16 %v124, %v123
    %141 = vmatprep.subr.bf16.mxu0 0
    %142 = vmatpush1.bf16.msra.mxu0 %v132
    %143 = vmatprep.subr.bf16.mxu0 0
    %144 = vmatpush1.bf16.msra.mxu0 %v131
    %145 = vmatprep.subr.bf16.mxu0 0
    %146 = vmatpush1.bf16.msra.mxu0 %v130
    %147 = vmatprep.subr.bf16.mxu0 0
    %148 = vmatpush1.bf16.msra.mxu0 %v129
    %149 = vmatprep.subr.bf16.mxu0 0
    %150 = vmatpush1.bf16.msra.mxu0 %v128
    %151 = vmatprep.subr.bf16.mxu0 0
    %152 = vmatpush1.bf16.msra.mxu0 %v127
    %153 = vmatprep.subr.bf16.mxu0 0
    %154 = vmatpush1.bf16.msra.mxu0 %v126
    %155 = vmatprep.subr.bf16.mxu0 0
    %156 = vmatpush1.bf16.msra.mxu0 %v125
    %157 = vmatprep.subr.bf16.mxu0 0
    %158 = vmatpush2.bf16.msra.mxu0 0
    %159 = vmatprep.subr.bf16.mxu0 0
    %160 = vmatpush2.bf16.msra.mxu0 0
    %161 = vmatprep.subr.bf16.mxu0 0
    %162 = vmatpush2.bf16.msra.mxu0 0
    %163 = vmatprep.subr.bf16.mxu0 0
    %164 = vmatpush2.bf16.msra.mxu0 0
    %165 = vmatprep.subr.bf16.mxu0 0
    %166 = vmatpush2.bf16.msra.mxu0 0
    %167 = vmatprep.subr.bf16.mxu0 0
    %168 = vmatpush2.bf16.msra.mxu0 0
    %169 = vmatprep.subr.bf16.mxu0 0
    %170 = vmatpush2.bf16.msra.mxu0 0
    %171 = vmatprep.subr.bf16.mxu0 0
    %172 = vmatpush2.bf16.msra.mxu0 0
    %173 = vmatprep.mubr.bf16.mxu0 0
    %174 = vmatmul.mubr.bf16.gmra.mxu0 %v86
    %v175 = vpop.f32.mrf.mxu0
    %v176 = vadd.f32 %v91, %v175
    %v177 = vpop.f32.mrf.mxu0
    %v178 = vpop.f32.mrf.mxu0
    %v179 = vpop.f32.mrf.mxu0
    %180 = vdwg.mxu0
    %v181 = vmax.f32 %v176, 0.0
    %v182 = vld [vmem:[#allocation4] sm:$0xf]
    %v183 = vld [vmem:[#allocation4 + $0x4] sm:$0xf]
    %v184 = vld [vmem:[#allocation4 + $0x8] sm:$0xf]
    %v185 = vld [vmem:[#allocation4 + $0xc] sm:$0xf]
    %v186 = vld [vmem:[#allocation4 + $0x10] sm:$0xf]
    %v187 = vld [vmem:[#allocation4 + $0x14] sm:$0xf]
    %v188 = vld [vmem:[#allocation4 + $0x18] sm:$0xf]
    %v189 = vld [vmem:[#allocation4 + $0x1c] sm:$0xf]
    %v190 = vld [vmem:[#allocation4 + $0x20] sm:$0xf]
    %v191 = vld [vmem:[#allocation4 + $0x24] sm:$0xf]
    %v192 = vld [vmem:[#allocation4 + $0x28] sm:$0xf]
    %v193 = vld [vmem:[#allocation4 + $0x2c] sm:$0xf]
    %v194 = vld [vmem:[#allocation4 + $0x30] sm:$0xf]
    %v195 = vld [vmem:[#allocation4 + $0x34] sm:$0xf]
    %v196 = vld [vmem:[#allocation4 + $0x38] sm:$0xf]
    %v197 = vld [vmem:[#allocation4 + $0x3c] sm:$0xf]
    %v198 = vld [vmem:[%s4] sm:$0x1]
    %v199 = vpack.c.bf16 %v181, %v181
    %v201 = vlaneseq
    %v202 = vshrl.u32 %v201, 7
    %v203 = vsub.s32 0, %v202
    %v204 = vrot.slane %v198, %v203
    %v222 = vunpack.c.l.b16 %v182
    %v223 = vunpack.c.l.b16 %v183
    %v224 = vunpack.c.l.b16 %v184
    %v225 = vunpack.c.l.b16 %v185
    %v226 = vunpack.c.l.b16 %v186
    %v227 = vunpack.c.l.b16 %v187
    %v228 = vunpack.c.l.b16 %v188
    %v229 = vunpack.c.l.b16 %v189
    %v230 = vunpack.c.l.b16 %v190
    %v231 = vunpack.c.l.b16 %v191
    %v232 = vunpack.c.l.b16 %v192
    %v233 = vunpack.c.l.b16 %v193
    %v234 = vunpack.c.l.b16 %v194
    %v235 = vunpack.c.l.b16 %v195
    %v236 = vunpack.c.l.b16 %v196
    %v237 = vunpack.c.l.b16 %v197
    %v238 = vpack.c.b16 %v223, %v222
    %v239 = vpack.c.b16 %v225, %v224
    %v240 = vpack.c.b16 %v227, %v226
    %v241 = vpack.c.b16 %v229, %v228
    %v242 = vpack.c.b16 %v231, %v230
    %v243 = vpack.c.b16 %v233, %v232
    %v244 = vpack.c.b16 %v235, %v234
    %v245 = vpack.c.b16 %v237, %v236
    %254 = vmatprep.subr.bf16.mxu0 0
    %255 = vmatpush1.bf16.msra.mxu0 %v245
    %256 = vmatprep.subr.bf16.mxu0 0
    %257 = vmatpush1.bf16.msra.mxu0 %v244
    %258 = vmatprep.subr.bf16.mxu0 0
    %259 = vmatpush1.bf16.msra.mxu0 %v243
    %260 = vmatprep.subr.bf16.mxu0 0
    %261 = vmatpush1.bf16.msra.mxu0 %v242
    %262 = vmatprep.subr.bf16.mxu0 0
    %263 = vmatpush1.bf16.msra.mxu0 %v241
    %264 = vmatprep.subr.bf16.mxu0 0
    %265 = vmatpush1.bf16.msra.mxu0 %v240
    %266 = vmatprep.subr.bf16.mxu0 0
    %267 = vmatpush1.bf16.msra.mxu0 %v239
    %268 = vmatprep.subr.bf16.mxu0 0
    %269 = vmatpush1.bf16.msra.mxu0 %v238
    %270 = vmatprep.subr.bf16.mxu0 0
    %271 = vmatpush2.bf16.msra.mxu0 0
    %272 = vmatprep.subr.bf16.mxu0 0
    %273 = vmatpush2.bf16.msra.mxu0 0
    %274 = vmatprep.subr.bf16.mxu0 0
    %275 = vmatpush2.bf16.msra.mxu0 0
    %276 = vmatprep.subr.bf16.mxu0 0
    %277 = vmatpush2.bf16.msra.mxu0 0
    %278 = vmatprep.subr.bf16.mxu0 0
    %279 = vmatpush2.bf16.msra.mxu0 0
    %280 = vmatprep.subr.bf16.mxu0 0
    %281 = vmatpush2.bf16.msra.mxu0 0
    %282 = vmatprep.subr.bf16.mxu0 0
    %283 = vmatpush2.bf16.msra.mxu0 0
    %284 = vmatprep.subr.bf16.mxu0 0
    %285 = vmatpush2.bf16.msra.mxu0 0
    %286 = vmatprep.mubr.bf16.mxu0 0
    %287 = vmatmul.mubr.bf16.gmra.mxu0 %v199
    %v288 = vpop.f32.mrf.mxu0
    %v289 = vadd.f32 %v204, %v288
    %v290 = vpop.f32.mrf.mxu0
    %v291 = vpop.f32.mrf.mxu0
    %v292 = vpop.f32.mrf.mxu0
    %293 = vdwg.mxu0
    %v294 = vmax.f32 %v289, 0.0
    %v295 = vld [vmem:[#allocation6] sm:$0xf]
    %v296 = vld [vmem:[#allocation6 + $0x4] sm:$0xf]
    %v297 = vld [vmem:[#allocation6 + $0x8] sm:$0xf]
    %v298 = vld [vmem:[#allocation6 + $0xc] sm:$0xf]
    %v299 = vld [vmem:[#allocation6 + $0x10] sm:$0xf]
    %v300 = vld [vmem:[#allocation6 + $0x14] sm:$0xf]
    %v301 = vld [vmem:[#allocation6 + $0x18] sm:$0xf]
    %v302 = vld [vmem:[#allocation6 + $0x1c] sm:$0xf]
    %v303 = vld [vmem:[#allocation6 + $0x20] sm:$0xf]
    %v304 = vld [vmem:[#allocation6 + $0x24] sm:$0xf]
    %v305 = vld [vmem:[#allocation6 + $0x28] sm:$0xf]
    %v306 = vld [vmem:[#allocation6 + $0x2c] sm:$0xf]
    %v307 = vld [vmem:[#allocation6 + $0x30] sm:$0xf]
    %v308 = vld [vmem:[#allocation6 + $0x34] sm:$0xf]
    %v309 = vld [vmem:[#allocation6 + $0x38] sm:$0xf]
    %v310 = vld [vmem:[#allocation6 + $0x3c] sm:$0xf]
    %v311 = vld [vmem:[%s6] sm:$0x1]
    %v312 = vpack.c.bf16 %v294, %v294
    %v314 = vlaneseq
    %v315 = vshrl.u32 %v314, 7
    %v316 = vsub.s32 0, %v315
    %v317 = vrot.slane %v311, %v316
    %v335 = vunpack.c.l.b16 %v295
    %v336 = vunpack.c.l.b16 %v296
    %v337 = vunpack.c.l.b16 %v297
    %v338 = vunpack.c.l.b16 %v298
    %v339 = vunpack.c.l.b16 %v299
    %v340 = vunpack.c.l.b16 %v300
    %v341 = vunpack.c.l.b16 %v301
    %v342 = vunpack.c.l.b16 %v302
    %v343 = vunpack.c.l.b16 %v303
    %v344 = vunpack.c.l.b16 %v304
    %v345 = vunpack.c.l.b16 %v305
    %v346 = vunpack.c.l.b16 %v306
    %v347 = vunpack.c.l.b16 %v307
    %v348 = vunpack.c.l.b16 %v308
    %v349 = vunpack.c.l.b16 %v309
    %v350 = vunpack.c.l.b16 %v310
    %v351 = vpack.c.b16 %v336, %v335
    %v352 = vpack.c.b16 %v338, %v337
    %v353 = vpack.c.b16 %v340, %v339
    %v354 = vpack.c.b16 %v342, %v341
    %v355 = vpack.c.b16 %v344, %v343
    %v356 = vpack.c.b16 %v346, %v345
    %v357 = vpack.c.b16 %v348, %v347
    %v358 = vpack.c.b16 %v350, %v349
    %367 = vmatprep.subr.bf16.mxu0 0
    %368 = vmatpush1.bf16.msra.mxu0 %v358
    %369 = vmatprep.subr.bf16.mxu0 0
    %370 = vmatpush1.bf16.msra.mxu0 %v357
    %371 = vmatprep.subr.bf16.mxu0 0
    %372 = vmatpush1.bf16.msra.mxu0 %v356
    %373 = vmatprep.subr.bf16.mxu0 0
    %374 = vmatpush1.bf16.msra.mxu0 %v355
    %375 = vmatprep.subr.bf16.mxu0 0
    %376 = vmatpush1.bf16.msra.mxu0 %v354
    %377 = vmatprep.subr.bf16.mxu0 0
    %378 = vmatpush1.bf16.msra.mxu0 %v353
    %379 = vmatprep.subr.bf16.mxu0 0
    %380 = vmatpush1.bf16.msra.mxu0 %v352
    %381 = vmatprep.subr.bf16.mxu0 0
    %382 = vmatpush1.bf16.msra.mxu0 %v351
    %383 = vmatprep.subr.bf16.mxu0 0
    %384 = vmatpush2.bf16.msra.mxu0 0
    %385 = vmatprep.subr.bf16.mxu0 0
    %386 = vmatpush2.bf16.msra.mxu0 0
    %387 = vmatprep.subr.bf16.mxu0 0
    %388 = vmatpush2.bf16.msra.mxu0 0
    %389 = vmatprep.subr.bf16.mxu0 0
    %390 = vmatpush2.bf16.msra.mxu0 0
    %391 = vmatprep.subr.bf16.mxu0 0
    %392 = vmatpush2.bf16.msra.mxu0 0
    %393 = vmatprep.subr.bf16.mxu0 0
    %394 = vmatpush2.bf16.msra.mxu0 0
    %395 = vmatprep.subr.bf16.mxu0 0
    %396 = vmatpush2.bf16.msra.mxu0 0
    %397 = vmatprep.subr.bf16.mxu0 0
    %398 = vmatpush2.bf16.msra.mxu0 0
    %399 = vmatprep.mubr.bf16.mxu0 0
    %400 = vmatmul.mubr.bf16.gmra.mxu0 %v312
    %v401 = vpop.f32.mrf.mxu0
    %v402 = vadd.f32 %v317, %v401
    %v403 = vpop.f32.mrf.mxu0
    %v404 = vpop.f32.mrf.mxu0
    %v405 = vpop.f32.mrf.mxu0
    %406 = vdwg.mxu0
    %407 = vst [vmem:[%s7] sm:$0xff] %v402
    // Predicated region
    $region42: #{mlp_forward_pallas.1} parent=1 // pred_check
      _
    $region43: #{mlp_forward_pallas.1} parent=1 // pred_check_branch
      %409 = sbr.rel (0) target = $region45
    $region44: #{mlp_forward_pallas.1} parent=1 // pred_region
      _
    $region45: #{mlp_forward_pallas.1} parent=1 // pred_fallthru
      _
    // Predicated region
    $region46: #{mlp_forward_pallas.1} parent=1 // pred_check
      _
    $region47: #{mlp_forward_pallas.1} parent=1 // pred_check_branch
      %411 = sbr.rel (0) target = $region49
    $region48: #{mlp_forward_pallas.1} parent=1 // pred_region
      _
    $region49: #{mlp_forward_pallas.1} parent=1 // pred_fallthru
      _
    %412 = vsyncpa [#allocation3], 1
    %413 = vsyncpa [#allocation5], 1

</llo_original>
